<compile_context>
chip_gen: v7x
topology: tpu7x:2x2x1
jax: 0.10.0
libtpu: 0.0.40
codegen_flags: <defaults>
</compile_context>

<pallas_src>
import functools
import math

import jax
import jax.numpy as jnp
import numpy as np
from jax import lax
from jax.experimental import pallas as pl
from jax.experimental.pallas import tpu as pltpu


# ---------------------------------------------------------------------------
# Hardware query (graceful fallbacks if a field is unavailable).
# ---------------------------------------------------------------------------
def _query_tpu():
    vmem_cap = 64 * 1024 * 1024          # conservative default (v7x per-TC VMEM)
    num_tc = 1                           # v5e / v6e: one TensorCore per chip
    try:
        info = pltpu.get_tpu_info()
        vc = getattr(info, "vmem_capacity_bytes", None)
        if vc:
            vmem_cap = int(vc)
        for name in ("num_cores", "core_count", "num_tensorcores",
                     "tensorcore_count", "num_tensor_cores"):
            v = getattr(info, name, None)
            if v:
                num_tc = int(v)
                break
        else:
            cv = getattr(info, "chip_version", None)
            if cv is not None and "7" in str(cv):
                num_tc = 2               # v7x: two TensorCores share the grid
    except Exception:
        pass
    return vmem_cap, num_tc


# ---------------------------------------------------------------------------
# Nearest-neighbor selection built with exact integer arithmetic.
# PyTorch default 'nearest': src = floor(dst * in_size / out_size), clamped.
# ---------------------------------------------------------------------------
def _src_index(out_size, in_size):
    d = np.arange(out_size, dtype=np.int64)
    return np.minimum((d * in_size) // out_size, in_size - 1)


def _onehot_np(src, in_size, out_axis):
    # out_axis=0 -> (out, in); out_axis=1 -> (in, out). Entries are exact 0/1.
    m = (src[:, None] == np.arange(in_size, dtype=np.int64)[None, :]).astype(np.float32)
    return m if out_axis == 0 else m.T


# ---------------------------------------------------------------------------
# Kernels.
# ---------------------------------------------------------------------------
def _upsample_slab_kernel(x_ref, r_ref, o_ref):
    # x_ref: (TB*H, W) input rows; r_ref: (W, K) resident 0/1 selection matrix
    # with K = sh_int * W_out (H and W replication folded together);
    # o_ref: (TB*H, K).  One MXU matmul, one whole-tile lane-dense store,
    # native dtype end-to-end (exact: each output column selects one input).
    o_ref[...] = jnp.dot(x_ref[...], r_ref[...],
                         preferred_element_type=o_ref.dtype)


def _upsample_frac_kernel(x_ref, rw_ref, rh_ref, o_ref):
    # Fractional-H fallback: two batched 0/1 matmuls, whole-tile store.
    # x_ref: (TB, H, W); rw_ref: (W, W_out); rh_ref: (H_out, H);
    # o_ref: (TB, H_out, W_out).
    tb = x_ref.shape[0]
    rw = jnp.broadcast_to(rw_ref[...][None], (tb,) + rw_ref.shape)
    rh = jnp.broadcast_to(rh_ref[...][None], (tb,) + rh_ref.shape)
    t = jnp.einsum('bhw,bwv->bhv', x_ref[...], rw,
                   preferred_element_type=o_ref.dtype)
    o_ref[...] = jnp.einsum('boh,bhv->bov', rh, t,
                            preferred_element_type=o_ref.dtype)


# ---------------------------------------------------------------------------
# Tile-size selection.
# ---------------------------------------------------------------------------
def _choose_tb(B, per_slice, align, budget, num_tc):
    tb = max(1, budget // max(per_slice, 1))
    tb = max(align, (tb // align) * align)
    b_cap = -(-B // align) * align
    tb = min(tb, b_cap)
    if num_tc > 1 and B >= 2 * num_tc * align:
        # Keep >=2 grid steps per TensorCore so each core can pipeline.
        cap = max(align, ((B // (2 * num_tc)) // align) * align)
        tb = min(tb, cap)
    return tb


# ---------------------------------------------------------------------------
# Wrapper.
# ---------------------------------------------------------------------------
def upsample_nearest(x: jax.Array, scale_factor) -> jax.Array:
    """Nearest-neighbor upsample of an NCHW tensor (Pallas TPU kernel)."""
    if isinstance(scale_factor, (tuple, list)):
        sh, sw = float(scale_factor[0]), float(scale_factor[1])
    else:
        sh = sw = float(scale_factor)

    N, C, H, W = x.shape
    H_out = int(math.floor(H * sh))
    W_out = int(math.floor(W * sw))
    B = N * C
    itemsize = np.dtype(x.dtype).itemsize

    sh_int = int(round(sh)) if float(sh).is_integer() else None
    if sh_int is not None and (sh_int < 1 or H_out != H * sh_int):
        sh_int = None

    vmem_cap, num_tc = _query_tpu()
    vmem_limit = int(vmem_cap * 0.9)
    budget = int(vmem_cap * 0.45)        # double-buffered in/out + temporaries
    cparams = pltpu.CompilerParams(dimension_semantics=("parallel",),
                                   vmem_limit_bytes=vmem_limit)

    src_w = _src_index(W_out, W)

    if sh_int is not None:
        # ----- Integer H scale: single combined matmul, 2-D slab layout -----
        K = sh_int * W_out
        rw = _onehot_np(src_w, W, out_axis=1)          # (W, W_out)
        r = np.tile(rw, (1, sh_int))                   # (W, K): r[w, s*W_out+v] = [w == src_w(v)]
        r = jnp.asarray(r, dtype=x.dtype)

        per_slice = H * (2 * W + 3 * K) * itemsize     # dbl-buffered in/out + matmul temp
        budget_eff = max(per_slice, budget - 2 * W * K * itemsize)
        align = 8 // math.gcd(H, 8)                    # keep block rows a multiple of 8
        tb = _choose_tb(B, per_slice, align, budget_eff, num_tc)
        B_pad = -(-B // tb) * tb

        xs = x.reshape(B * H, W)
        if B_pad > B:
            xs = jnp.pad(xs, ((0, (B_pad - B) * H), (0, 0)))

        out = pl.pallas_call(
            _upsample_slab_kernel,
            out_shape=jax.ShapeDtypeStruct((B_pad * H, K), x.dtype),
            grid_spec=pltpu.PrefetchScalarGridSpec(
                num_scalar_prefetch=0,
                grid=(B_pad // tb,),
                in_specs=[pl.BlockSpec((tb * H, W), lambda b: (b, 0)),
                          pl.BlockSpec((W, K), lambda b: (0, 0))],  # resident one-hot
                out_specs=pl.BlockSpec((tb * H, K), lambda b: (b, 0))),
            compiler_params=cparams,
        )(xs, r)

        out = out[:B * H]
        # Free (metadata) reshape: (B*H, sh*W_out) rows are exactly the NCHW layout.
        return out.reshape(N, C, H_out, W_out)

    # ----- Fractional H scale: two batched one-hot matmuls ------------------
    src_h = _src_index(H_out, H)
    rw = jnp.asarray(_onehot_np(src_w, W, out_axis=1), dtype=x.dtype)   # (W, W_out)
    rh = jnp.asarray(_onehot_np(src_h, H, out_axis=0), dtype=x.dtype)   # (H_out, H)

    per_slice = (2 * H * W + 3 * H_out * W_out + H * W_out
                 + W * W_out + H_out * H) * itemsize
    budget_eff = max(per_slice, budget - 2 * (W * W_out + H_out * H) * itemsize)
    tb = _choose_tb(B, per_slice, 1, budget_eff, num_tc)
    B_pad = -(-B // tb) * tb

    xs = x.reshape(B, H, W)
    if B_pad > B:
        xs = jnp.pad(xs, ((0, B_pad - B), (0, 0), (0, 0)))

    out = pl.pallas_call(
        _upsample_frac_kernel,
        out_shape=jax.ShapeDtypeStruct((B_pad, H_out, W_out), x.dtype),
        grid_spec=pltpu.PrefetchScalarGridSpec(
            num_scalar_prefetch=0,
            grid=(B_pad // tb,),
            in_specs=[pl.BlockSpec((tb, H, W), lambda b: (b, 0, 0)),
                      pl.BlockSpec((W, W_out), lambda b: (0, 0)),
                      pl.BlockSpec((H_out, H), lambda b: (0, 0))],
            out_specs=pl.BlockSpec((tb, H_out, W_out), lambda b: (b, 0, 0))),
        compiler_params=cparams,
    )(xs, rw, rh)

    return out[:B].reshape(N, C, H_out, W_out)


# ---------------------------------------------------------------------------
# Pure-JAX reference (PyTorch 'nearest' semantics: src = floor(dst*in/out)).
# ---------------------------------------------------------------------------
def _reference_nearest(x, scale_factor):
    if isinstance(scale_factor, (tuple, list)):
        sh, sw = float(scale_factor[0]), float(scale_factor[1])
    else:
        sh = sw = float(scale_factor)
    N, C, H, W = x.shape
    H_out = int(math.floor(H * sh))
    W_out = int(math.floor(W * sw))
    ih = jnp.asarray(_src_index(H_out, H).astype(np.int32))
    iw = jnp.asarray(_src_index(W_out, W).astype(np.int32))
    return x[:, :, ih[:, None], iw[None, :]]


if __name__ == "__main__":
    key = jax.random.PRNGKey(0)
    N, C, H, W = 2, 4, 16, 16
    scale_factor = 2
    x = jax.random.normal(key, (N, C, H, W), dtype=jnp.float32)

    y = upsample_nearest(x, scale_factor)
    y = jax.block_until_ready(y)

    y_ref = _reference_nearest(x, scale_factor)
    assert y.shape == (N, C, H * scale_factor, W * scale_factor), y.shape
    np.testing.assert_allclose(np.asarray(y), np.asarray(y_ref), rtol=1e-6, atol=1e-6)

    print("KERNEL_OK")
</pallas_src>

<mosaic_0001>
module attributes {stable_mosaic.version = 11 : i64} {
  func.func @_upsample_slab_kernel(%arg0: i32, %arg1: memref<128x16xf32, #tpu.memory_space<vmem>>, %arg2: memref<16x64xf32, #tpu.memory_space<vmem>>, %arg3: memref<128x64xf32, #tpu.memory_space<vmem>>) attributes {dimension_semantics = [#tpu.dimension_semantics<parallel>], iteration_bounds = array<i64: 1>, scalar_prefetch = 0 : i64, scratch_operands = 0 : i64, tpu.core_type = #tpu.core_type<tc>, window_params = [{transform_indices = @transform_0, window_bounds = array<i64: 128, 16>}, {pipeline_mode = #tpu.pipeline_mode<synchronous>, transform_indices = @transform_1, window_bounds = array<i64: 16, 64>}, {transform_indices = @transform_2, window_bounds = array<i64: 128, 64>}]} {
    %c0 = arith.constant 0 : index
    %c0_0 = arith.constant 0 : index
    %0 = vector.load %arg1[%c0, %c0_0] : memref<128x16xf32, #tpu.memory_space<vmem>>, vector<128x16xf32>
    %c0_1 = arith.constant 0 : index
    %c0_2 = arith.constant 0 : index
    %1 = vector.load %arg2[%c0_1, %c0_2] : memref<16x64xf32, #tpu.memory_space<vmem>>, vector<16x64xf32>
    %cst = arith.constant dense<0.000000e+00> : vector<128x64xf32>
    %2 = tpu.matmul %0, %1, %cst {dimension_numbers = #tpu.dot_dimension_numbers<[1], [0], [0], [1], [0, 0, 1, 1], [], []>} : vector<128x16xf32>, vector<16x64xf32>, vector<128x64xf32> -> vector<128x64xf32>
    %c0_3 = arith.constant 0 : index
    %c0_4 = arith.constant 0 : index
    %3 = vector.load %arg3[%c0_3, %c0_4] : memref<128x64xf32, #tpu.memory_space<vmem>>, vector<128x64xf32>
    tpu.vector_store %arg3[%c0_3, %c0_4], %2 {strides = array<i32>} : memref<128x64xf32, #tpu.memory_space<vmem>>, vector<128x64xf32>,
    return
  }
  func.func @transform_0(%arg0: i32) -> (i32, i32) {
    %c0_i32 = arith.constant 0 : i32
    %c0_i32_0 = arith.constant 0 : i32
    return %arg0, %c0_i32 : i32, i32
  }
  func.func @transform_1(%arg0: i32) -> (i32, i32) {
    %c0_i32 = arith.constant 0 : i32
    %c0_i32_0 = arith.constant 0 : i32
    %c0_i32_1 = arith.constant 0 : i32
    return %c0_i32, %c0_i32_0 : i32, i32
  }
  func.func @transform_2(%arg0: i32) -> (i32, i32) {
    %c0_i32 = arith.constant 0 : i32
    %c0_i32_0 = arith.constant 0 : i32
    return %arg0, %c0_i32 : i32, i32
  }
}

</mosaic_0001>

<llo_original>
// kernel: tpu_custom_call.1
$region0: #{tpu_custom_call.1}
  #allocation0 [shape = 'u32[]', space=smem, size = 0x4, offset = 0x4, fixed_abs, tag = 'smem constant byte address 0x4 - core index']
  #allocation1 [shape = 'u32[144,128]{1,0:T(1,128)}', space=vmem, size = 0x12000, scoped, tag = 'internal scratch']
  %s0 = inlined_call_operand.vmem [shape: f32[128,16], index: 0, kind: input, shape index: {}]
  %s1 = inlined_call_operand.vmem [shape: f32[16,64], index: 1, kind: input, shape index: {}]
  %s2 = inlined_call_operand.vmem [shape: f32[128,64], index: 2, kind: output, shape index: {}]
  %s3 = sld [smem:[#allocation0]]
  $region18: #{tpu_custom_call.1} parent=0
    _
  %s5 = ssub.s32 1, %s3
  %s6 = scalar_select 0, %s5, %s3
  // Predicated region
  $region2: #{tpu_custom_call.1} parent=0 // pred_check
    _
  $region3: #{tpu_custom_call.1} parent=0 // pred_check_branch
    %8 = sbr.rel (0) target = $region5
  $region4: #{tpu_custom_call.1} parent=0 // pred_region
    _
  $region5: #{tpu_custom_call.1} parent=0 // pred_fallthru
    _
  // Predicated region
  $region6: #{tpu_custom_call.1} parent=0 // pred_check
    _
  $region7: #{tpu_custom_call.1} parent=0 // pred_check_branch
    %10 = sbr.rel (0) target = $region9
  $region8: #{tpu_custom_call.1} parent=0 // pred_region
    _
  $region9: #{tpu_custom_call.1} parent=0 // pred_fallthru
    _
  %v11 = vld [vmem:[%s0] sm:$0xff]
  %v12 = vld [vmem:[%s0 + $0x8] sm:$0xff]
  %v13 = vld [vmem:[%s0 + $0x10] sm:$0xff]
  %v14 = vld [vmem:[%s0 + $0x18] sm:$0xff]
  %v15 = vld [vmem:[%s0 + $0x20] sm:$0xff]
  %v16 = vld [vmem:[%s0 + $0x28] sm:$0xff]
  %v17 = vld [vmem:[%s0 + $0x30] sm:$0xff]
  %v18 = vld [vmem:[%s0 + $0x38] sm:$0xff]
  %v19 = vld [vmem:[%s0 + $0x40] sm:$0xff]
  %v20 = vld [vmem:[%s0 + $0x48] sm:$0xff]
  %v21 = vld [vmem:[%s0 + $0x50] sm:$0xff]
  %v22 = vld [vmem:[%s0 + $0x58] sm:$0xff]
  %v23 = vld [vmem:[%s0 + $0x60] sm:$0xff]
  %v24 = vld [vmem:[%s0 + $0x68] sm:$0xff]
  %v25 = vld [vmem:[%s0 + $0x70] sm:$0xff]
  %v26 = vld [vmem:[%s0 + $0x78] sm:$0xff]
  %v27 = vld [vmem:[%s1] sm:$0xff]
  %v28 = vld [vmem:[%s1 + $0x8] sm:$0xff]
  %vm29 = vcmask 130048
  %v31 = vsel %vm29, %v11, 0
  %v34 = vsel %vm29, %v12, 0
  %v37 = vsel %vm29, %v13, 0
  %v40 = vsel %vm29, %v14, 0
  %v43 = vsel %vm29, %v15, 0
  %v46 = vsel %vm29, %v16, 0
  %v49 = vsel %vm29, %v17, 0
  %v52 = vsel %vm29, %v18, 0
  %v55 = vsel %vm29, %v19, 0
  %v58 = vsel %vm29, %v20, 0
  %v61 = vsel %vm29, %v21, 0
  %v64 = vsel %vm29, %v22, 0
  %v67 = vsel %vm29, %v23, 0
  %v70 = vsel %vm29, %v24, 0
  %v73 = vsel %vm29, %v25, 0
  %v76 = vsel %vm29, %v26, 0
  %78 = vmatprep.subr.mxu0 0.0
  %79 = vmatpush1.msra.mxu0 %v27
  %80 = vmatprep.subr.mxu0 0.0
  %81 = vmatpush1.msra.mxu0 %v28
  %82 = vmatprep.subr.mxu0 0.0
  %83 = vmatpush1.msra.mxu0 0.0
  %84 = vmatprep.subr.mxu0 0.0
  %85 = vmatpush1.msra.mxu0 0.0
  %86 = vmatprep.subr.mxu0 0.0
  %87 = vmatpush1.msra.mxu0 0.0
  %88 = vmatprep.subr.mxu0 0.0
  %89 = vmatpush1.msra.mxu0 0.0
  %90 = vmatprep.subr.mxu0 0.0
  %91 = vmatpush1.msra.mxu0 0.0
  %92 = vmatprep.subr.mxu0 0.0
  %93 = vmatpush1.msra.mxu0 0.0
  %94 = vmatprep.subr.mxu0 0.0
  %95 = vmatpush1.msra.mxu0 0.0
  %96 = vmatprep.subr.mxu0 0.0
  %97 = vmatpush1.msra.mxu0 0.0
  %98 = vmatprep.subr.mxu0 0.0
  %99 = vmatpush1.msra.mxu0 0.0
  %100 = vmatprep.subr.mxu0 0.0
  %101 = vmatpush1.msra.mxu0 0.0
  %102 = vmatprep.subr.mxu0 0.0
  %103 = vmatpush1.msra.mxu0 0.0
  %104 = vmatprep.subr.mxu0 0.0
  %105 = vmatpush1.msra.mxu0 0.0
  %106 = vmatprep.subr.mxu0 0.0
  %107 = vmatpush1.msra.mxu0 0.0
  %108 = vmatprep.subr.mxu0 0.0
  %109 = vmatpush1.msra.mxu0 0.0
  %110 = vmatprep.subr.mxu0 0.0
  %111 = vmatpush1.msra.mxu0 0.0
  %112 = vmatprep.subr.mxu0 0.0
  %113 = vmatpush1.msra.mxu0 0.0
  %114 = vmatprep.subr.mxu0 0.0
  %115 = vmatpush1.msra.mxu0 0.0
  %116 = vmatprep.subr.mxu0 0.0
  %117 = vmatpush1.msra.mxu0 0.0
  %118 = vmatprep.subr.mxu0 0.0
  %119 = vmatpush1.msra.mxu0 0.0
  %120 = vmatprep.subr.mxu0 0.0
  %121 = vmatpush1.msra.mxu0 0.0
  %122 = vmatprep.subr.mxu0 0.0
  %123 = vmatpush1.msra.mxu0 0.0
  %124 = vmatprep.subr.mxu0 0.0
  %125 = vmatpush1.msra.mxu0 0.0
  %126 = vmatprep.subr.mxu0 0.0
  %127 = vmatpush1.msra.mxu0 0.0
  %128 = vmatprep.subr.mxu0 0.0
  %129 = vmatpush1.msra.mxu0 0.0
  %130 = vmatprep.subr.mxu0 0.0
  %131 = vmatpush1.msra.mxu0 0.0
  %132 = vmatprep.subr.mxu0 0.0
  %133 = vmatpush1.msra.mxu0 0.0
  %134 = vmatprep.subr.mxu0 0.0
  %135 = vmatpush1.msra.mxu0 0.0
  %136 = vmatprep.subr.mxu0 0.0
  %137 = vmatpush1.msra.mxu0 0.0
  %138 = vmatprep.subr.mxu0 0.0
  %139 = vmatpush1.msra.mxu0 0.0
  %140 = vmatprep.subr.mxu0 0.0
  %141 = vmatpush1.msra.mxu0 0.0
  %142 = vmatprep.mubr.f32.mxu0 0.0
  %143 = vmatmul.mubr.f32.gmra.mrb[0].mxu0 %v31
  %v144 = vpop.f32.mrb[0].mxu0
  %v145 = vadd.f32 0.0, %v144
  %v146 = vpop.f32.mrb[0].mxu0
  %147 = vmatprep.mubr.f32.mxu0 0.0
  %148 = vmatmul.mubr.f32.gmra.mrb[0].mxu0 %v34
  %v149 = vpop.f32.mrb[0].mxu0
  %v150 = vadd.f32 0.0, %v149
  %v151 = vpop.f32.mrb[0].mxu0
  %152 = vmatprep.mubr.f32.mxu0 0.0
  %153 = vmatmul.mubr.f32.gmra.mrb[0].mxu0 %v37
  %v154 = vpop.f32.mrb[0].mxu0
  %v155 = vadd.f32 0.0, %v154
  %v156 = vpop.f32.mrb[0].mxu0
  %157 = vmatprep.mubr.f32.mxu0 0.0
  %158 = vmatmul.mubr.f32.gmra.mrb[0].mxu0 %v40
  %v159 = vpop.f32.mrb[0].mxu0
  %v160 = vadd.f32 0.0, %v159
  %v161 = vpop.f32.mrb[0].mxu0
  %162 = vmatprep.mubr.f32.mxu0 0.0
  %163 = vmatmul.mubr.f32.gmra.mrb[0].mxu0 %v43
  %v164 = vpop.f32.mrb[0].mxu0
  %v165 = vadd.f32 0.0, %v164
  %v166 = vpop.f32.mrb[0].mxu0
  %167 = vmatprep.mubr.f32.mxu0 0.0
  %168 = vmatmul.mubr.f32.gmra.mrb[0].mxu0 %v46
  %v169 = vpop.f32.mrb[0].mxu0
  %v170 = vadd.f32 0.0, %v169
  %v171 = vpop.f32.mrb[0].mxu0
  %172 = vmatprep.mubr.f32.mxu0 0.0
  %173 = vmatmul.mubr.f32.gmra.mrb[0].mxu0 %v49
  %v174 = vpop.f32.mrb[0].mxu0
  %v175 = vadd.f32 0.0, %v174
  %v176 = vpop.f32.mrb[0].mxu0
  %177 = vmatprep.mubr.f32.mxu0 0.0
  %178 = vmatmul.mubr.f32.gmra.mrb[0].mxu0 %v52
  %v179 = vpop.f32.mrb[0].mxu0
  %v180 = vadd.f32 0.0, %v179
  %v181 = vpop.f32.mrb[0].mxu0
  %182 = vmatprep.mubr.f32.mxu0 0.0
  %183 = vmatmul.mubr.f32.gmra.mrb[0].mxu0 %v55
  %v184 = vpop.f32.mrb[0].mxu0
  %v185 = vadd.f32 0.0, %v184
  %v186 = vpop.f32.mrb[0].mxu0
  %187 = vmatprep.mubr.f32.mxu0 0.0
  %188 = vmatmul.mubr.f32.gmra.mrb[0].mxu0 %v58
  %v189 = vpop.f32.mrb[0].mxu0
  %v190 = vadd.f32 0.0, %v189
  %v191 = vpop.f32.mrb[0].mxu0
  %192 = vmatprep.mubr.f32.mxu0 0.0
  %193 = vmatmul.mubr.f32.gmra.mrb[0].mxu0 %v61
  %v194 = vpop.f32.mrb[0].mxu0
  %v195 = vadd.f32 0.0, %v194
  %v196 = vpop.f32.mrb[0].mxu0
  %197 = vmatprep.mubr.f32.mxu0 0.0
  %198 = vmatmul.mubr.f32.gmra.mrb[0].mxu0 %v64
  %v199 = vpop.f32.mrb[0].mxu0
  %v200 = vadd.f32 0.0, %v199
  %v201 = vpop.f32.mrb[0].mxu0
  %202 = vmatprep.mubr.f32.mxu0 0.0
  %203 = vmatmul.mubr.f32.gmra.mrb[0].mxu0 %v67
  %v204 = vpop.f32.mrb[0].mxu0
  %v205 = vadd.f32 0.0, %v204
  %v206 = vpop.f32.mrb[0].mxu0
  %207 = vmatprep.mubr.f32.mxu0 0.0
  %208 = vmatmul.mubr.f32.gmra.mrb[0].mxu0 %v70
  %v209 = vpop.f32.mrb[0].mxu0
  %v210 = vadd.f32 0.0, %v209
  %v211 = vpop.f32.mrb[0].mxu0
  %212 = vmatprep.mubr.f32.mxu0 0.0
  %213 = vmatmul.mubr.f32.gmra.mrb[0].mxu0 %v73
  %v214 = vpop.f32.mrb[0].mxu0
  %v215 = vadd.f32 0.0, %v214
  %v216 = vpop.f32.mrb[0].mxu0
  %217 = vmatprep.mubr.f32.mxu0 0.0
  %218 = vmatmul.mubr.f32.gmra.mrb[0].mxu0 %v76
  %v219 = vpop.f32.mrb[0].mxu0
  %v220 = vadd.f32 0.0, %v219
  %v221 = vpop.f32.mrb[0].mxu0
  %222 = vdwg.mxu0
  %vm223 = vcmask 523264
  %224 = vst.msk [vmem:[%s2] sm:$0xff] %vm223, %v145
  %225 = vst.msk [vmem:[%s2 + $0x8] sm:$0xff] %vm223, %v150
  %226 = vst.msk [vmem:[%s2 + $0x10] sm:$0xff] %vm223, %v155
  %227 = vst.msk [vmem:[%s2 + $0x18] sm:$0xff] %vm223, %v160
  %228 = vst.msk [vmem:[%s2 + $0x20] sm:$0xff] %vm223, %v165
  %229 = vst.msk [vmem:[%s2 + $0x28] sm:$0xff] %vm223, %v170
  %230 = vst.msk [vmem:[%s2 + $0x30] sm:$0xff] %vm223, %v175
  %231 = vst.msk [vmem:[%s2 + $0x38] sm:$0xff] %vm223, %v180
  %232 = vst.msk [vmem:[%s2 + $0x40] sm:$0xff] %vm223, %v185
  %233 = vst.msk [vmem:[%s2 + $0x48] sm:$0xff] %vm223, %v190
  %234 = vst.msk [vmem:[%s2 + $0x50] sm:$0xff] %vm223, %v195
  %235 = vst.msk [vmem:[%s2 + $0x58] sm:$0xff] %vm223, %v200
  %236 = vst.msk [vmem:[%s2 + $0x60] sm:$0xff] %vm223, %v205
  %237 = vst.msk [vmem:[%s2 + $0x68] sm:$0xff] %vm223, %v210
  %238 = vst.msk [vmem:[%s2 + $0x70] sm:$0xff] %vm223, %v215
  %239 = vst.msk [vmem:[%s2 + $0x78] sm:$0xff] %vm223, %v220
  // Predicated region
  $region10: #{tpu_custom_call.1} parent=0 // pred_check
    _
  $region11: #{tpu_custom_call.1} parent=0 // pred_check_branch
    %241 = sbr.rel (0) target = $region13
  $region12: #{tpu_custom_call.1} parent=0 // pred_region
    _
  $region13: #{tpu_custom_call.1} parent=0 // pred_fallthru
    _
  // Predicated region
  $region14: #{tpu_custom_call.1} parent=0 // pred_check
    _
  $region15: #{tpu_custom_call.1} parent=0 // pred_check_branch
    %243 = sbr.rel (0) target = $region17
  $region16: #{tpu_custom_call.1} parent=0 // pred_region
    _
  $region17: #{tpu_custom_call.1} parent=0 // pred_fallthru
    _

</llo_original>
